<compile_context>
chip_gen: v5e
topology: v5e:2x2
jax: 0.10.0
libtpu: 0.0.40
codegen_flags: <defaults>
</compile_context>

<pallas_src>
import functools
import math

import jax
import jax.numpy as jnp
from jax.experimental import pallas as pl
from jax.experimental.pallas import tpu as pltpu


def _round_up(n: int, m: int) -> int:
    return ((n + m - 1) // m) * m


def _cdiv(a: int, b: int) -> int:
    return -(-a // b)


def _pick_batch_tile(B: int, requested: int) -> int:
    """Batch (MXU-M) tile: multiple of 16 (bf16 sublane packing).

    For B >= 32, aim for >= 2 grid steps and an even step count so both v7x
    TensorCores get balanced work from the "parallel" batch axis.
    """
    if B < 32:
        return max(16, _round_up(B, 16))
    bt_max = max(16, _round_up(min(requested, B), 16))
    steps = max(2, _cdiv(B, bt_max))
    if steps % 2:
        steps += 1
    return max(16, _round_up(_cdiv(B, steps), 16))


def _mlp_kernel(*refs, num_layers: int, normalize_output: bool):
    """Fused MLP forward for one batch tile.

    refs = (x_ref, w0_ref, b0_ref, w1_ref, b1_ref, ..., out_ref)
    x/weights are bf16 (feature dims padded to 128-multiples); matmuls
    accumulate in f32; bias/ReLU/softmax run in f32 (v5e-safe).
    Padded output lanes are masked via the -1e30-padded final bias, so no
    iota/select is needed here.
    """
    x_ref = refs[0]
    o_ref = refs[-1]

    h = x_ref[...]                       # bf16 activation tile
    for layer in range(num_layers):
        w_ref = refs[1 + 2 * layer]
        b_ref = refs[2 + 2 * layer]
        acc = jnp.dot(h, w_ref[...], preferred_element_type=jnp.float32)
        acc = acc + b_ref[...]           # f32 bias (broadcast over rows)
        if layer < num_layers - 1:       # ReLU after every layer but the last
            acc = jnp.maximum(acc, 0.0)
            h = acc.astype(jnp.bfloat16)  # back to bf16 for the next MXU pass
        else:
            h = acc                      # final logits stay f32

    if normalize_output:                 # F.softmax(..., dim=-1)
        # Padded lanes carry ~-1e30 logits (from the padded bias) -> exp -> 0.
        m = jnp.max(h, axis=-1, keepdims=True)
        e = jnp.exp(h - m)
        denom = jnp.sum(e, axis=-1, keepdims=True)
        h = e * pl.reciprocal(denom, approx=True)   # EUP vrcp - effectively free

    o_ref[...] = h.astype(o_ref.dtype)


def prepare_embedding_params(params, *, normalize_output: bool = False):
    """One-time padding/cast of weights (hoisted out of the per-call path).

    params = [(w0, b0), (w1, b1), ...]; wi: (in, out) f32, bi: (out,) or (1, out).
    Every feature dim is zero-padded to a multiple of 128 (lane-dense loads,
    full MXU K/N). Weights go to bf16. If `normalize_output`, the *final*
    layer's padded bias lanes are filled with -1e30 so padded logits vanish in
    the softmax without any in-kernel masking.
    """
    num_layers = len(params)
    dims = [params[0][0].shape[0]] + [w.shape[1] for (w, _) in params]
    dims_p = [_round_up(d, 128) for d in dims]

    flat = []
    for li, (w, b) in enumerate(params):
        in_pad, out_pad = dims_p[li], dims_p[li + 1]
        w_p = (jnp.zeros((in_pad, out_pad), jnp.bfloat16)
               .at[: w.shape[0], : w.shape[1]].set(w.astype(jnp.bfloat16)))
        b_flat = jnp.reshape(b, (-1,)).astype(jnp.float32)
        is_last = li == num_layers - 1
        needs_mask = normalize_output and is_last and out_pad > b_flat.shape[0]
        fill = -1e30 if needs_mask else 0.0   # finite (avoid inf-inf NaN paths)
        b_p = (jnp.full((1, out_pad), fill, jnp.float32)
               .at[:, : b_flat.shape[0]].set(b_flat[None, :]))
        flat.extend([w_p, b_p])

    return {
        "flat": tuple(flat),
        "dims": tuple(dims),
        "dims_p": tuple(dims_p),
        "num_layers": num_layers,
        "normalize_output": normalize_output,
    }


def embedding_forward(x, prepared, *, batch_tile: int = 256):
    """Fused Pallas MLP forward. `prepared` comes from prepare_embedding_params."""
    B, D = x.shape
    dims = prepared["dims"]
    dims_p = prepared["dims_p"]
    num_layers = prepared["num_layers"]
    normalize_output = prepared["normalize_output"]
    flat = prepared["flat"]
    assert D == dims[0], f"input dim mismatch: {D} != {dims[0]}"

    out_dim = dims[-1]
    in_p, out_p = dims_p[0], dims_p[-1]
    out_dtype = x.dtype

    bt = _pick_batch_tile(B, batch_tile)
    B_p = _round_up(B, bt)

    # Skip the padded copy entirely when no padding is needed (bf16 cast only).
    if B_p == B and in_p == D:
        x_p = x.astype(jnp.bfloat16)
    else:
        x_p = (jnp.zeros((B_p, in_p), jnp.bfloat16)
               .at[:B, :D].set(x.astype(jnp.bfloat16)))

    # If a profile shows exposed input DMA, deepen x/out pipelining with
    # pipeline_mode=pl.Buffered(3) here (cheap: bt*in_p*2 B per extra buffer).
    in_specs = [pl.BlockSpec((bt, in_p), lambda i: (i, 0))]
    for li in range(num_layers):
        in_pad, out_pad = dims_p[li], dims_p[li + 1]
        # Grid-invariant blocks: DMA'd once -> single-buffer to halve residency.
        # TODO(synk): for layers whose padded bf16 weights exceed ~half of VMEM
        # (v7x: 64 MiB), switch to a K/N-tiled "arbitrary" grid axis with an
        # f32 accumulator scratch instead of whole-weight residency.
        in_specs.append(pl.BlockSpec((in_pad, out_pad), lambda i: (0, 0),
                                     pipeline_mode=pl.Buffered(1)))
        in_specs.append(pl.BlockSpec((1, out_pad), lambda i: (0, 0),
                                     pipeline_mode=pl.Buffered(1)))

    kernel = functools.partial(
        _mlp_kernel, num_layers=num_layers, normalize_output=normalize_output)

    # Cost estimate (advisory for XLA scheduling around the custom call).
    flops = 2 * B_p * sum(a * b for a, b in zip(dims_p[:-1], dims_p[1:]))
    transcendentals = B_p * out_p if normalize_output else 0
    bytes_accessed = int(
        x_p.size * 2
        + sum(int(t.size) * t.dtype.itemsize for t in flat)
        + B_p * out_p * jnp.dtype(out_dtype).itemsize)

    # Explicit VMEM budget: x/out tiles double-buffered, weights/biases
    # single-buffered, plus f32 activation working set, plus ~25% headroom.
    itemsize_out = jnp.dtype(out_dtype).itemsize
    weight_bytes = sum(dims_p[i] * dims_p[i + 1] * 2 + dims_p[i + 1] * 4
                       for i in range(num_layers))
    act_bytes = (2 * bt * in_p * 2
                 + 2 * bt * out_p * itemsize_out
                 + 4 * bt * max(dims_p) * 4)
    vmem_limit = int(min(max(1.25 * (weight_bytes + act_bytes), 8 << 20), 64 << 20))

    out_padded = pl.pallas_call(
        kernel,
        out_shape=jax.ShapeDtypeStruct((B_p, out_p), out_dtype),
        grid_spec=pltpu.PrefetchScalarGridSpec(
            num_scalar_prefetch=0,
            grid=(B_p // bt,),
            in_specs=in_specs,
            out_specs=pl.BlockSpec((bt, out_p), lambda i: (i, 0)),
        ),
        compiler_params=pltpu.CompilerParams(
            dimension_semantics=("parallel",),   # shard batch tiles across v7x's 2 TCs
            vmem_limit_bytes=vmem_limit,
        ),
        cost_estimate=pl.CostEstimate(
            flops=flops,
            transcendentals=transcendentals,
            bytes_accessed=bytes_accessed,
        ),
    )(x_p, *flat)

    return out_padded[:B, :out_dim]


def make_embedding_params(key, input_dim, output_dim, hidden_layer_dims):
    """Deterministic Xavier-normal weights, zero biases (matches _initialize_weights)."""
    dims = [input_dim] + list(hidden_layer_dims) + [output_dim]
    params = []
    for fan_in, fan_out in zip(dims[:-1], dims[1:]):
        key, sub = jax.random.split(key)
        std = math.sqrt(2.0 / (fan_in + fan_out))
        w = std * jax.random.normal(sub, (fan_in, fan_out), dtype=jnp.float32)
        b = jnp.zeros((1, fan_out), dtype=jnp.float32)
        params.append((w, b))
    return params


def embedding_reference(x, params, normalize_output):
    h = x.astype(jnp.float32)
    for i, (w, b) in enumerate(params):
        h = h @ w + b
        if i < len(params) - 1:
            h = jnp.maximum(h, 0.0)
    if normalize_output:
        h = jax.nn.softmax(h, axis=-1)
    return h


if __name__ == "__main__":
    # Shapes consistent with the module: Embedding(input_dim=32, output_dim=16,
    # cnt_hidden_layers=1, hidden_layer_dims=[20], normalize_output=True),
    # batch of 8 states.
    input_dim, output_dim = 32, 16
    hidden_layer_dims = [20]
    batch = 8

    key = jax.random.PRNGKey(0)
    kx, kp = jax.random.split(key)
    x = jax.random.normal(kx, (batch, input_dim), dtype=jnp.float32)
    params = make_embedding_params(kp, input_dim, output_dim, hidden_layer_dims)

    prepared = prepare_embedding_params(params, normalize_output=True)  # one-time pad/cast
    out = jax.block_until_ready(embedding_forward(x, prepared))
    ref = embedding_reference(x, params, True)

    assert out.shape == (batch, output_dim)
    # bf16 matmul + approx reciprocal -> loosen tolerance vs the f32 reference.
    assert jnp.allclose(out, ref, atol=2e-2, rtol=2e-2), "mismatch vs JAX reference"
    assert jnp.allclose(jnp.sum(out, axis=-1), 1.0, atol=5e-3), "softmax rows must sum to ~1"

    # Second case: larger ragged batch, two hidden layers, no softmax -
    # exercises the multi-step (even, 2-TC-balanced) batch grid and padding.
    x2 = jax.random.normal(jax.random.PRNGKey(1), (300, input_dim), dtype=jnp.float32)
    params2 = make_embedding_params(jax.random.PRNGKey(2), input_dim, output_dim, [64, 20])
    prepared2 = prepare_embedding_params(params2, normalize_output=False)
    out2 = jax.block_until_ready(embedding_forward(x2, prepared2))
    ref2 = embedding_reference(x2, params2, False)
    assert out2.shape == (300, output_dim)
    assert jnp.allclose(out2, ref2, atol=3e-2, rtol=3e-2), "mismatch vs JAX reference (case 2)"

    print("KERNEL_OK")
</pallas_src>

<mosaic_0001>
module attributes {stable_mosaic.version = 11 : i64} {
  func.func @_mlp_kernel(%arg0: i32, %arg1: memref<16x128xbf16, #tpu.memory_space<vmem>>, %arg2: memref<128x128xbf16, #tpu.memory_space<vmem>>, %arg3: memref<1x128xf32, #tpu.memory_space<vmem>>, %arg4: memref<128x128xbf16, #tpu.memory_space<vmem>>, %arg5: memref<1x128xf32, #tpu.memory_space<vmem>>, %arg6: memref<16x128xf32, #tpu.memory_space<vmem>>) attributes {dimension_semantics = [#tpu.dimension_semantics<parallel>], iteration_bounds = array<i64: 1>, scalar_prefetch = 0 : i64, scratch_operands = 0 : i64, tpu.core_type = #tpu.core_type<tc>, window_params = [{transform_indices = @transform_0, window_bounds = array<i64: 16, 128>}, {pipeline_mode = #tpu.pipeline_mode<synchronous>, transform_indices = @transform_1, window_bounds = array<i64: 128, 128>}, {pipeline_mode = #tpu.pipeline_mode<synchronous>, transform_indices = @transform_2, window_bounds = array<i64: 1, 128>}, {pipeline_mode = #tpu.pipeline_mode<synchronous>, transform_indices = @transform_3, window_bounds = array<i64: 128, 128>}, {pipeline_mode = #tpu.pipeline_mode<synchronous>, transform_indices = @transform_4, window_bounds = array<i64: 1, 128>}, {transform_indices = @transform_5, window_bounds = array<i64: 16, 128>}]} {
    %c0 = arith.constant 0 : index
    %c0_0 = arith.constant 0 : index
    %0 = vector.load %arg1[%c0, %c0_0] : memref<16x128xbf16, #tpu.memory_space<vmem>>, vector<16x128xbf16>
    %c0_1 = arith.constant 0 : index
    %c0_2 = arith.constant 0 : index
    %1 = vector.load %arg2[%c0_1, %c0_2] : memref<128x128xbf16, #tpu.memory_space<vmem>>, vector<128x128xbf16>
    %cst = arith.constant dense<0.000000e+00> : vector<16x128xf32>
    %2 = tpu.matmul %0, %1, %cst {dimension_numbers = #tpu.dot_dimension_numbers<[1], [0], [0], [1], [0, 0, 1, 1], [], []>} : vector<16x128xbf16>, vector<128x128xbf16>, vector<16x128xf32> -> vector<16x128xf32>
    %c0_3 = arith.constant 0 : index
    %c0_4 = arith.constant 0 : index
    %3 = vector.load %arg3[%c0_3, %c0_4] : memref<1x128xf32, #tpu.memory_space<vmem>>, vector<1x128xf32>
    %4 = vector.broadcast %3 : vector<1x128xf32> to vector<16x128xf32>
    %5 = arith.addf %2, %4 : vector<16x128xf32>
    %cst_5 = arith.constant 0.000000e+00 : f32
    %6 = vector.broadcast %cst_5 : f32 to vector<16x128xf32>
    %7 = arith.maximumf %5, %6 : vector<16x128xf32>
    %8 = arith.truncf %7 : vector<16x128xf32> to vector<16x128xbf16>
    %c0_6 = arith.constant 0 : index
    %c0_7 = arith.constant 0 : index
    %9 = vector.load %arg4[%c0_6, %c0_7] : memref<128x128xbf16, #tpu.memory_space<vmem>>, vector<128x128xbf16>
    %cst_8 = arith.constant dense<0.000000e+00> : vector<16x128xf32>
    %10 = tpu.matmul %8, %9, %cst_8 {dimension_numbers = #tpu.dot_dimension_numbers<[1], [0], [0], [1], [0, 0, 1, 1], [], []>} : vector<16x128xbf16>, vector<128x128xbf16>, vector<16x128xf32> -> vector<16x128xf32>
    %c0_9 = arith.constant 0 : index
    %c0_10 = arith.constant 0 : index
    %11 = vector.load %arg5[%c0_9, %c0_10] : memref<1x128xf32, #tpu.memory_space<vmem>>, vector<1x128xf32>
    %12 = vector.broadcast %11 : vector<1x128xf32> to vector<16x128xf32>
    %13 = arith.addf %10, %12 : vector<16x128xf32>
    %cst_11 = arith.constant dense<0xFF800000> : vector<16xf32>
    %14 = vector.multi_reduction <maximumf>, %13, %cst_11 [1] : vector<16x128xf32> to vector<16xf32>
    %15 = vector.shape_cast %14 : vector<16xf32> to vector<16x1xf32>
    %16 = vector.broadcast %15 : vector<16x1xf32> to vector<16x128xf32>
    %17 = arith.subf %13, %16 : vector<16x128xf32>
    %18 = math.exp %17 : vector<16x128xf32>
    %cst_12 = arith.constant dense<0.000000e+00> : vector<16xf32>
    %19 = vector.multi_reduction <add>, %18, %cst_12 [1] : vector<16x128xf32> to vector<16xf32>
    %20 = vector.shape_cast %19 : vector<16xf32> to vector<16x1xf32>
    %21 = tpu.reciprocal %20 {approx = true} : vector<16x1xf32> -> vector<16x1xf32>
    %22 = vector.broadcast %21 : vector<16x1xf32> to vector<16x128xf32>
    %23 = arith.mulf %18, %22 : vector<16x128xf32>
    %c0_13 = arith.constant 0 : index
    %c0_14 = arith.constant 0 : index
    %24 = vector.load %arg6[%c0_13, %c0_14] : memref<16x128xf32, #tpu.memory_space<vmem>>, vector<16x128xf32>
    tpu.vector_store %arg6[%c0_13, %c0_14], %23 {strides = array<i32>} : memref<16x128xf32, #tpu.memory_space<vmem>>, vector<16x128xf32>,
    return
  }
  func.func @transform_0(%arg0: i32) -> (i32, i32) {
    %c0_i32 = arith.constant 0 : i32
    %c0_i32_0 = arith.constant 0 : i32
    return %arg0, %c0_i32 : i32, i32
  }
  func.func @transform_1(%arg0: i32) -> (i32, i32) {
    %c0_i32 = arith.constant 0 : i32
    %c0_i32_0 = arith.constant 0 : i32
    %c0_i32_1 = arith.constant 0 : i32
    return %c0_i32, %c0_i32_0 : i32, i32
  }
  func.func @transform_2(%arg0: i32) -> (i32, i32) {
    %c0_i32 = arith.constant 0 : i32
    %c0_i32_0 = arith.constant 0 : i32
    %c0_i32_1 = arith.constant 0 : i32
    return %c0_i32, %c0_i32_0 : i32, i32
  }
  func.func @transform_3(%arg0: i32) -> (i32, i32) {
    %c0_i32 = arith.constant 0 : i32
    %c0_i32_0 = arith.constant 0 : i32
    %c0_i32_1 = arith.constant 0 : i32
    return %c0_i32, %c0_i32_0 : i32, i32
  }
  func.func @transform_4(%arg0: i32) -> (i32, i32) {
    %c0_i32 = arith.constant 0 : i32
    %c0_i32_0 = arith.constant 0 : i32
    %c0_i32_1 = arith.constant 0 : i32
    return %c0_i32, %c0_i32_0 : i32, i32
  }
  func.func @transform_5(%arg0: i32) -> (i32, i32) {
    %c0_i32 = arith.constant 0 : i32
    %c0_i32_0 = arith.constant 0 : i32
    return %arg0, %c0_i32 : i32, i32
  }
}

</mosaic_0001>

<llo_original>
// kernel: tpu_custom_call.1
$region0: #{tpu_custom_call.1}
  #allocation0 [shape = 'u32[]', space=smem, size = 0x4, offset = 0x4, fixed_abs, tag = 'smem constant byte address 0x4 - core index']
  #allocation1 [shape = 'u32[72,128]{1,0:T(1,128)}', space=vmem, size = 0x9000, scoped, tag = 'internal scratch']
  %s0 = inlined_call_operand.hbm [shape: bf16[16,128], index: 0, kind: input, shape index: {}]
  %s1 = inlined_call_operand.hbm [shape: bf16[128,128], index: 1, kind: input, shape index: {}]
  %s2 = inlined_call_operand.vmem [shape: f32[1,128], index: 2, kind: input, shape index: {}]
  %s3 = inlined_call_operand.hbm [shape: bf16[128,128], index: 3, kind: input, shape index: {}]
  %s4 = inlined_call_operand.vmem [shape: f32[1,128], index: 4, kind: input, shape index: {}]
  %s5 = inlined_call_operand.hbm [shape: f32[16,128], index: 5, kind: output, shape index: {}]
  %s6 = sld [smem:[#allocation0]]
  $region42: #{tpu_custom_call.1} parent=0
    _
  %s8 = ssub.s32 1, %s6
  %s9 = scalar_select 0, %s8, %s6
  $region1: #{tpu_custom_call.1} parent=0
    #allocation2 [shape = 'u8[4096]{0}', space=vmem, size = 0x1000, scoped, tag = 'input window, operand 0, single buffered']
    #allocation3 [shape = 's32[1]{0}', space=sflag, size = 0x4, scoped, tag = 'scoped memory for tpu_custom_call.1']
    #allocation4 [shape = 's32[1]{0}', space=sflag, size = 0x4, scoped, tag = 'scoped memory for tpu_custom_call.1']
    #allocation5 [shape = 'u8[32768]{0}', space=vmem, size = 0x8000, scoped, tag = 'input window, operand 1, single buffered']
    #allocation6 [shape = 's32[1]{0}', space=sflag, size = 0x4, scoped, tag = 'scoped memory for tpu_custom_call.1']
    #allocation7 [shape = 'u8[32768]{0}', space=vmem, size = 0x8000, scoped, tag = 'input window, operand 3, single buffered']
    #allocation8 [shape = 'u8[8192]{0}', space=vmem, size = 0x2000, scoped, tag = 'output window, operand 0, single buffered']
    %10 = vsyncpa [#allocation3], 0
    %11 = vsyncpa [#allocation6], 0
    %12 = vsyncpa [#allocation4], 0
    // Predicated region
    $region2: #{tpu_custom_call.1} parent=1 // pred_check
      _
    $region3: #{tpu_custom_call.1} parent=1 // pred_check_branch
      %14 = sbr.rel (0) target = $region5
    $region4: #{tpu_custom_call.1} parent=1 // pred_region
      %16 = vsyncadd [#allocation3], 0
      %s17 = sshll.u32 %s0, 4
      %s18 = int_to_ptr.hbm [resolvable:$true] %s17
      %s19 = sshll.u32 [#allocation2], 4
      %s20 = int_to_ptr.vmem [resolvable:$true] %s19
      %25 = dma.hbm_to_vmem [thread:$0]  %s18, 128, %s20, [#allocation3], 64, 64, 4
    $region5: #{tpu_custom_call.1} parent=1 // pred_fallthru
      _
    // Predicated region
    $region6: #{tpu_custom_call.1} parent=1 // pred_check
      _
    $region7: #{tpu_custom_call.1} parent=1 // pred_check_branch
      %27 = sbr.rel (0) target = $region9
    $region8: #{tpu_custom_call.1} parent=1 // pred_region
      %29 = vsyncadd [#allocation6], 0
      %s30 = sshll.u32 %s1, 4
      %s31 = int_to_ptr.hbm [resolvable:$true] %s30
      %s32 = sshll.u32 [#allocation5], 4
      %s33 = int_to_ptr.vmem [resolvable:$true] %s32
      %38 = dma.hbm_to_vmem [thread:$0]  %s31, 1024, %s33, [#allocation6], 64, 64, 4
    $region9: #{tpu_custom_call.1} parent=1 // pred_fallthru
      _
    // Predicated region
    $region10: #{tpu_custom_call.1} parent=1 // pred_check
      _
    $region11: #{tpu_custom_call.1} parent=1 // pred_check_branch
      %40 = sbr.rel (0) target = $region13
    $region12: #{tpu_custom_call.1} parent=1 // pred_region
      _
    $region13: #{tpu_custom_call.1} parent=1 // pred_fallthru
      _
    // Predicated region
    $region14: #{tpu_custom_call.1} parent=1 // pred_check
      _
    $region15: #{tpu_custom_call.1} parent=1 // pred_check_branch
      %42 = sbr.rel (0) target = $region17
    $region16: #{tpu_custom_call.1} parent=1 // pred_region
      %44 = vsyncadd [#allocation6], 0
      %s45 = sshll.u32 %s3, 4
      %s46 = int_to_ptr.hbm [resolvable:$true] %s45
      %s47 = sshll.u32 [#allocation7], 4
      %s48 = int_to_ptr.vmem [resolvable:$true] %s47
      %53 = dma.hbm_to_vmem [thread:$0]  %s46, 1024, %s48, [#allocation6], 64, 64, 4
    $region17: #{tpu_custom_call.1} parent=1 // pred_fallthru
      _
    // Predicated region
    $region18: #{tpu_custom_call.1} parent=1 // pred_check
      _
    $region19: #{tpu_custom_call.1} parent=1 // pred_check_branch
      %55 = sbr.rel (0) target = $region21
    $region20: #{tpu_custom_call.1} parent=1 // pred_region
      _
    $region21: #{tpu_custom_call.1} parent=1 // pred_fallthru
      _
    // Predicated region
    $region22: #{tpu_custom_call.1} parent=1 // pred_check
      _
    $region23: #{tpu_custom_call.1} parent=1 // pred_check_branch
      %57 = sbr.rel (0) target = $region25
    $region24: #{tpu_custom_call.1} parent=1 // pred_region
      %59 = dma.done [#allocation3], 128
    $region25: #{tpu_custom_call.1} parent=1 // pred_fallthru
      _
    // Predicated region
    $region26: #{tpu_custom_call.1} parent=1 // pred_check
      _
    $region27: #{tpu_custom_call.1} parent=1 // pred_check_branch
      %61 = sbr.rel (0) target = $region29
    $region28: #{tpu_custom_call.1} parent=1 // pred_region
      %63 = dma.done [#allocation6], 1024
    $region29: #{tpu_custom_call.1} parent=1 // pred_fallthru
      _
    // Predicated region
    $region30: #{tpu_custom_call.1} parent=1 // pred_check
      _
    $region31: #{tpu_custom_call.1} parent=1 // pred_check_branch
      %65 = sbr.rel (0) target = $region33
    $region32: #{tpu_custom_call.1} parent=1 // pred_region
      %67 = dma.done [#allocation6], 1024
    $region33: #{tpu_custom_call.1} parent=1 // pred_fallthru
      _
    %v68 = vld [vmem:[#allocation2] sm:$0xf]
    %v69 = vld [vmem:[#allocation2 + $0x4] sm:$0xf]
    %v70 = vld [vmem:[#allocation5] sm:$0xf]
    %v71 = vld [vmem:[#allocation5 + $0x4] sm:$0xf]
    %v72 = vld [vmem:[#allocation5 + $0x8] sm:$0xf]
    %v73 = vld [vmem:[#allocation5 + $0xc] sm:$0xf]
    %v74 = vld [vmem:[#allocation5 + $0x10] sm:$0xf]
    %v75 = vld [vmem:[#allocation5 + $0x14] sm:$0xf]
    %v76 = vld [vmem:[#allocation5 + $0x18] sm:$0xf]
    %v77 = vld [vmem:[#allocation5 + $0x1c] sm:$0xf]
    %v78 = vld [vmem:[#allocation5 + $0x20] sm:$0xf]
    %v79 = vld [vmem:[#allocation5 + $0x24] sm:$0xf]
    %v80 = vld [vmem:[#allocation5 + $0x28] sm:$0xf]
    %v81 = vld [vmem:[#allocation5 + $0x2c] sm:$0xf]
    %v82 = vld [vmem:[#allocation5 + $0x30] sm:$0xf]
    %v83 = vld [vmem:[#allocation5 + $0x34] sm:$0xf]
    %v84 = vld [vmem:[#allocation5 + $0x38] sm:$0xf]
    %v85 = vld [vmem:[#allocation5 + $0x3c] sm:$0xf]
    %v86 = vld [vmem:[%s2] sm:$0x1]
    %v88 = vperm.slane %v86, 0
    %v92 = vunpack.c.l.b16 %v68
    %v93 = vunpack.c.l.b16 %v69
    %v94 = vpack.c.b16 %v93, %v92
    %v112 = vunpack.c.l.b16 %v70
    %v113 = vunpack.c.l.b16 %v71
    %v114 = vunpack.c.l.b16 %v72
    %v115 = vunpack.c.l.b16 %v73
    %v116 = vunpack.c.l.b16 %v74
    %v117 = vunpack.c.l.b16 %v75
    %v118 = vunpack.c.l.b16 %v76
    %v119 = vunpack.c.l.b16 %v77
    %v120 = vunpack.c.l.b16 %v78
    %v121 = vunpack.c.l.b16 %v79
    %v122 = vunpack.c.l.b16 %v80
    %v123 = vunpack.c.l.b16 %v81
    %v124 = vunpack.c.l.b16 %v82
    %v125 = vunpack.c.l.b16 %v83
    %v126 = vunpack.c.l.b16 %v84
    %v127 = vunpack.c.l.b16 %v85
    %v128 = vpack.c.b16 %v113, %v112
    %v129 = vpack.c.b16 %v115, %v114
    %v130 = vpack.c.b16 %v117, %v116
    %v131 = vpack.c.b16 %v119, %v118
    %v132 = vpack.c.b16 %v121, %v120
    %v133 = vpack.c.b16 %v123, %v122
    %v134 = vpack.c.b16 %v125, %v124
    %v135 = vpack.c.b16 %v127, %v126
    %144 = vmatpush.bf16.msra.mxu0 %v135
    %145 = vmatpush.bf16.msra.mxu0 %v134
    %146 = vmatpush.bf16.msra.mxu0 %v133
    %147 = vmatpush.bf16.msra.mxu0 %v132
    %148 = vmatpush.bf16.msra.mxu0 %v131
    %149 = vmatpush.bf16.msra.mxu0 %v130
    %150 = vmatpush.bf16.msra.mxu0 %v129
    %151 = vmatpush.bf16.msra.mxu0 %v128
    %152 = vmatmul.bf16.gmra.mxu0 %v94
    %v153 = vpop.f32.mrf.mxu0
    %v154 = vadd.f32 %v88, %v153
    %v155 = vpop.f32.mrf.mxu0
    %v156 = vadd.f32 %v88, %v155
    %157 = vdwg.mxu0
    %v158 = vmax.f32 %v154, 0.0
    %v159 = vmax.f32 %v156, 0.0
    %v160 = vpack.c.bf16 %v159, %v158
    %v161 = vld [vmem:[#allocation7] sm:$0xf]
    %v162 = vld [vmem:[#allocation7 + $0x4] sm:$0xf]
    %v163 = vld [vmem:[#allocation7 + $0x8] sm:$0xf]
    %v164 = vld [vmem:[#allocation7 + $0xc] sm:$0xf]
    %v165 = vld [vmem:[#allocation7 + $0x10] sm:$0xf]
    %v166 = vld [vmem:[#allocation7 + $0x14] sm:$0xf]
    %v167 = vld [vmem:[#allocation7 + $0x18] sm:$0xf]
    %v168 = vld [vmem:[#allocation7 + $0x1c] sm:$0xf]
    %v169 = vld [vmem:[#allocation7 + $0x20] sm:$0xf]
    %v170 = vld [vmem:[#allocation7 + $0x24] sm:$0xf]
    %v171 = vld [vmem:[#allocation7 + $0x28] sm:$0xf]
    %v172 = vld [vmem:[#allocation7 + $0x2c] sm:$0xf]
    %v173 = vld [vmem:[#allocation7 + $0x30] sm:$0xf]
    %v174 = vld [vmem:[#allocation7 + $0x34] sm:$0xf]
    %v175 = vld [vmem:[#allocation7 + $0x38] sm:$0xf]
    %v176 = vld [vmem:[#allocation7 + $0x3c] sm:$0xf]
    %v177 = vld [vmem:[%s4] sm:$0x1]
    %v179 = vperm.slane %v177, 0
    %v197 = vunpack.c.l.b16 %v161
    %v198 = vunpack.c.l.b16 %v162
    %v199 = vunpack.c.l.b16 %v163
    %v200 = vunpack.c.l.b16 %v164
    %v201 = vunpack.c.l.b16 %v165
    %v202 = vunpack.c.l.b16 %v166
    %v203 = vunpack.c.l.b16 %v167
    %v204 = vunpack.c.l.b16 %v168
    %v205 = vunpack.c.l.b16 %v169
    %v206 = vunpack.c.l.b16 %v170
    %v207 = vunpack.c.l.b16 %v171
    %v208 = vunpack.c.l.b16 %v172
    %v209 = vunpack.c.l.b16 %v173
    %v210 = vunpack.c.l.b16 %v174
    %v211 = vunpack.c.l.b16 %v175
    %v212 = vunpack.c.l.b16 %v176
    %v213 = vpack.c.b16 %v198, %v197
    %v214 = vpack.c.b16 %v200, %v199
    %v215 = vpack.c.b16 %v202, %v201
    %v216 = vpack.c.b16 %v204, %v203
    %v217 = vpack.c.b16 %v206, %v205
    %v218 = vpack.c.b16 %v208, %v207
    %v219 = vpack.c.b16 %v210, %v209
    %v220 = vpack.c.b16 %v212, %v211
    %229 = vmatpush.bf16.msra.mxu0 %v220
    %230 = vmatpush.bf16.msra.mxu0 %v219
    %231 = vmatpush.bf16.msra.mxu0 %v218
    %232 = vmatpush.bf16.msra.mxu0 %v217
    %233 = vmatpush.bf16.msra.mxu0 %v216
    %234 = vmatpush.bf16.msra.mxu0 %v215
    %235 = vmatpush.bf16.msra.mxu0 %v214
    %236 = vmatpush.bf16.msra.mxu0 %v213
    %237 = vmatmul.bf16.gmra.mxu0 %v160
    %v238 = vpop.f32.mrf.mxu0
    %v239 = vadd.f32 %v179, %v238
    %v240 = vpop.f32.mrf.mxu0
    %v241 = vadd.f32 %v179, %v240
    %242 = vdwg.mxu0
    %243 = vmax.xlane.f32.xlu0 %v239
    %v244 = vpop.xlane.xlu0 %243
    %245 = vmax.xlane.f32.xlu0 %v241
    %v246 = vpop.xlane.xlu0 %245
    %v247 = vsub.f32 %v239, %v244
    %v248 = vsub.f32 %v241, %v246
    %v249 = vmul.f32 %v247, 1.442695
    %v250 = vpow.pop %v249
    %v251 = vmul.f32 %v248, 1.442695
    %v252 = vpow.pop %v251
    %253 = vadd.xlane.f32.xlu0 %v250
    %v254 = vpop.xlane.xlu0 %253
    %255 = vadd.xlane.f32.xlu0 %v252
    %v256 = vpop.xlane.xlu0 %255
    %v257 = vrcp.pop %v254
    %v258 = vrcp.pop %v256
    %v259 = vmul.f32 %v250, %v257
    %v260 = vmul.f32 %v252, %v258
    %261 = vst [vmem:[#allocation8] sm:$0xff] %v259
    %262 = vst [vmem:[#allocation8 + $0x8] sm:$0xff] %v260
    // Predicated region
    $region34: #{tpu_custom_call.1} parent=1 // pred_check
      _
    $region35: #{tpu_custom_call.1} parent=1 // pred_check_branch
      %264 = sbr.rel (0) target = $region37
    $region36: #{tpu_custom_call.1} parent=1 // pred_region
      %266 = vsyncadd [#allocation4], 0
      %s267 = sshll.u32 [#allocation8], 4
      %s268 = int_to_ptr.vmem [resolvable:$true] %s267
      %s269 = sshll.u32 %s5, 4
      %s270 = int_to_ptr.hbm [resolvable:$true] %s269
      %275 = dma.vmem_to_hbm [thread:$0]  %s268, 256, %s270, [#allocation4], 128, 128, 8
    $region37: #{tpu_custom_call.1} parent=1 // pred_fallthru
      _
    // Predicated region
    $region38: #{tpu_custom_call.1} parent=1 // pred_check
      _
    $region39: #{tpu_custom_call.1} parent=1 // pred_check_branch
      %277 = sbr.rel (0) target = $region41
    $region40: #{tpu_custom_call.1} parent=1 // pred_region
      %279 = dma.done [#allocation4], 256
    $region41: #{tpu_custom_call.1} parent=1 // pred_fallthru
      _
    %280 = vsyncpa [#allocation3], 1
    %281 = vsyncpa [#allocation6], 1
    %282 = vsyncpa [#allocation4], 1

</llo_original>
